<compile_context>
chip_gen: v7x
topology: tpu7x:2x2x1
jax: 0.10.0
libtpu: 0.0.40
codegen_flags: <defaults>
</compile_context>

<pallas_src>
import functools

import jax
import jax.numpy as jnp
from jax.experimental import pallas as pl
from jax.experimental.pallas import tpu as pltpu

LANE = 128      # TPU lane width (last dim)
SUBLANE = 8     # f32 sublane width (second-to-last dim)


def _round_up(n, m):
    return (n + m - 1) // m * m


def _choose_block_b(batch, max_block_b):
    """Batch tile: as big as the cap allows, but keep >=2 grid steps when the
    batch permits so both v7x TensorCores get a parallel step."""
    b8 = _round_up(max(batch, SUBLANE), SUBLANE)
    if b8 <= SUBLANE:
        return SUBLANE
    half = _round_up((b8 + 1) // 2, SUBLANE)   # ~half the batch, sublane-aligned
    return int(min(max_block_b, half))


# ----------------------------------------------------------------------------
# Kernel: one batch tile of the whole MLP.  fc1 + ReLU + fc2, MXU matmuls,
# f32 accumulation, lane-dense (padded-to-128) output store.
# ----------------------------------------------------------------------------
def fused_mlp_kernel(x_ref, w1_ref, b1_ref, w2_ref, b2_ref, o_ref):
    x = x_ref[...]                                                   # (Bt, Dp)
    h = jnp.dot(x, w1_ref[...], preferred_element_type=jnp.float32)  # (Bt, Hp)
    h = jnp.maximum(h + b1_ref[...], 0.0)
    y = jnp.dot(h, w2_ref[...], preferred_element_type=jnp.float32)  # (Bt, Np)
    o_ref[...] = (y + b2_ref[...]).astype(o_ref.dtype)


# ----------------------------------------------------------------------------
# Wrapper: flatten (torch x.view(B, -1)), pad to TPU-friendly shapes, run one
# fused pallas_call over batch tiles, slice back to the true logits.
# ----------------------------------------------------------------------------
@functools.partial(jax.jit, static_argnames=("max_block_b",))
def mlp_forward(x, params, max_block_b=512):
    w1, b1 = params["fc1_w"], params["fc1_b"]   # (D, H), (H,)
    w2, b2 = params["fc2_w"], params["fc2_b"]   # (H, N), (N,)

    B = x.shape[0]
    x2 = x.reshape(B, -1)                        # == torch x.view(B, -1)
    D = x2.shape[1]
    H = w1.shape[1]
    N = w2.shape[1]

    # Lane-dense zero padding (math stays exact: padded contraction rows/cols
    # contribute zero, padded output cols are zero and get sliced off).
    Dp = _round_up(D, LANE)
    Hp = _round_up(H, LANE)
    Np = _round_up(N, LANE)

    Bt = _choose_block_b(B, max_block_b)
    Bp = _round_up(max(B, Bt), Bt)

    # Single fused pad of x for batch + contraction dims; skipped if a no-op.
    if Bp == B and Dp == D:
        xp = x2
    else:
        xp = jnp.pad(x2, ((0, Bp - B), (0, Dp - D)))

    # Weight/bias padding (tiny, ~0.5 MB total; exact zeros).
    w1p = jnp.pad(w1, ((0, Dp - D), (0, Hp - H)))
    b1p = jnp.pad(b1, (0, Hp - H)).reshape(1, Hp)
    w2p = jnp.pad(w2, ((0, Hp - H), (0, Np - N)))
    b2p = jnp.pad(b2, (0, Np - N)).reshape(1, Np)

    itemsize = jnp.dtype(x.dtype).itemsize
    cost = pl.CostEstimate(
        flops=2 * Bp * (Dp * Hp + Hp * Np),
        transcendentals=0,
        bytes_accessed=(Bp * Dp + Dp * Hp + Hp + Hp * Np + Np + Bp * Np)
        * itemsize,
    )

    # Constant-index operands (weights / biases): single pipeline buffer.
    resident = functools.partial(pl.BlockSpec, pipeline_mode=pl.Buffered(1))

    out = pl.pallas_call(
        fused_mlp_kernel,
        out_shape=jax.ShapeDtypeStruct((Bp, Np), x.dtype),
        grid=(Bp // Bt,),
        in_specs=[
            pl.BlockSpec((Bt, Dp), lambda i: (i, 0)),   # x tile (double-buffered)
            resident((Dp, Hp), lambda i: (0, 0)),       # fc1 weight (resident)
            resident((1, Hp), lambda i: (0, 0)),        # fc1 bias
            resident((Hp, Np), lambda i: (0, 0)),       # fc2 weight (padded)
            resident((1, Np), lambda i: (0, 0)),        # fc2 bias (padded)
        ],
        out_specs=pl.BlockSpec((Bt, Np), lambda i: (i, 0)),
        compiler_params=pltpu.CompilerParams(
            dimension_semantics=("parallel",)),
        cost_estimate=cost,
    )(xp, w1p, b1p, w2p, b2p)

    return out[:B, :N]


# ----------------------------------------------------------------------------
# Pure-JAX reference (correctness check only).
# ----------------------------------------------------------------------------
def mlp_ref(x, params):
    x2 = x.reshape(x.shape[0], -1)
    h = jnp.maximum(x2 @ params["fc1_w"] + params["fc1_b"], 0.0)
    return h @ params["fc2_w"] + params["fc2_b"]


def init_params(key, input_size=28 * 28, hidden_size=128, num_classes=10):
    ks = jax.random.split(key, 4)

    def u(k, shape, fan_in):
        bound = 1.0 / (fan_in ** 0.5)
        return jax.random.uniform(k, shape, jnp.float32, -bound, bound)

    # Stored as (in_features, out_features): transpose of torch nn.Linear
    # storage, same math (y = x @ W + b).
    return {
        "fc1_w": u(ks[0], (input_size, hidden_size), input_size),
        "fc1_b": u(ks[1], (hidden_size,), input_size),
        "fc2_w": u(ks[2], (hidden_size, num_classes), hidden_size),
        "fc2_b": u(ks[3], (num_classes,), hidden_size),
    }


if __name__ == "__main__":
    key = jax.random.PRNGKey(0)
    k_x, k_p = jax.random.split(key)

    # MLP spec implies 28x28 single-channel inputs flattened to 784.
    # Batch 16 -> the tile chooser picks Bt=8, grid=(2,): two parallel steps,
    # so both v7x TensorCores get work even at this small test size.
    x = jax.random.normal(k_x, (16, 1, 28, 28), dtype=jnp.float32)
    params = init_params(k_p)

    out = jax.block_until_ready(mlp_forward(x, params))
    ref = jax.block_until_ready(mlp_ref(x, params))

    assert out.shape == (16, 10) and out.dtype == jnp.float32
    assert bool(jnp.allclose(out, ref, rtol=2e-4, atol=2e-4)), "mismatch vs reference"

    print("KERNEL_OK")
</pallas_src>

<mosaic_0001>
module attributes {stable_mosaic.version = 11 : i64} {
  func.func @fused_mlp_kernel(%arg0: i32, %arg1: memref<8x896xf32, #tpu.memory_space<vmem>>, %arg2: memref<896x128xf32, #tpu.memory_space<vmem>>, %arg3: memref<1x128xf32, #tpu.memory_space<vmem>>, %arg4: memref<128x128xf32, #tpu.memory_space<vmem>>, %arg5: memref<1x128xf32, #tpu.memory_space<vmem>>, %arg6: memref<8x128xf32, #tpu.memory_space<vmem>>) attributes {dimension_semantics = [#tpu.dimension_semantics<parallel>], iteration_bounds = array<i64: 2>, scalar_prefetch = 0 : i64, scratch_operands = 0 : i64, tpu.core_type = #tpu.core_type<tc>, window_params = [{transform_indices = @transform_0, window_bounds = array<i64: 8, 896>}, {pipeline_mode = #tpu.pipeline_mode<synchronous>, transform_indices = @transform_1, window_bounds = array<i64: 896, 128>}, {pipeline_mode = #tpu.pipeline_mode<synchronous>, transform_indices = @transform_2, window_bounds = array<i64: 1, 128>}, {pipeline_mode = #tpu.pipeline_mode<synchronous>, transform_indices = @transform_3, window_bounds = array<i64: 128, 128>}, {pipeline_mode = #tpu.pipeline_mode<synchronous>, transform_indices = @transform_4, window_bounds = array<i64: 1, 128>}, {transform_indices = @transform_5, window_bounds = array<i64: 8, 128>}]} {
    %c0 = arith.constant 0 : index
    %c0_0 = arith.constant 0 : index
    %0 = vector.load %arg1[%c0, %c0_0] : memref<8x896xf32, #tpu.memory_space<vmem>>, vector<8x896xf32>
    %c0_1 = arith.constant 0 : index
    %c0_2 = arith.constant 0 : index
    %1 = vector.load %arg2[%c0_1, %c0_2] : memref<896x128xf32, #tpu.memory_space<vmem>>, vector<896x128xf32>
    %cst = arith.constant dense<0.000000e+00> : vector<8x128xf32>
    %2 = tpu.matmul %0, %1, %cst {dimension_numbers = #tpu.dot_dimension_numbers<[1], [0], [0], [1], [0, 0, 1, 1], [], []>} : vector<8x896xf32>, vector<896x128xf32>, vector<8x128xf32> -> vector<8x128xf32>
    %c0_3 = arith.constant 0 : index
    %c0_4 = arith.constant 0 : index
    %3 = vector.load %arg3[%c0_3, %c0_4] : memref<1x128xf32, #tpu.memory_space<vmem>>, vector<1x128xf32>
    %4 = vector.broadcast %3 : vector<1x128xf32> to vector<8x128xf32>
    %5 = arith.addf %2, %4 : vector<8x128xf32>
    %cst_5 = arith.constant 0.000000e+00 : f32
    %6 = vector.broadcast %cst_5 : f32 to vector<8x128xf32>
    %7 = arith.maximumf %5, %6 : vector<8x128xf32>
    %c0_6 = arith.constant 0 : index
    %c0_7 = arith.constant 0 : index
    %8 = vector.load %arg4[%c0_6, %c0_7] : memref<128x128xf32, #tpu.memory_space<vmem>>, vector<128x128xf32>
    %cst_8 = arith.constant dense<0.000000e+00> : vector<8x128xf32>
    %9 = tpu.matmul %7, %8, %cst_8 {dimension_numbers = #tpu.dot_dimension_numbers<[1], [0], [0], [1], [0, 0, 1, 1], [], []>} : vector<8x128xf32>, vector<128x128xf32>, vector<8x128xf32> -> vector<8x128xf32>
    %c0_9 = arith.constant 0 : index
    %c0_10 = arith.constant 0 : index
    %10 = vector.load %arg5[%c0_9, %c0_10] : memref<1x128xf32, #tpu.memory_space<vmem>>, vector<1x128xf32>
    %11 = vector.broadcast %10 : vector<1x128xf32> to vector<8x128xf32>
    %12 = arith.addf %9, %11 : vector<8x128xf32>
    %c0_11 = arith.constant 0 : index
    %c0_12 = arith.constant 0 : index
    %13 = vector.load %arg6[%c0_11, %c0_12] : memref<8x128xf32, #tpu.memory_space<vmem>>, vector<8x128xf32>
    tpu.vector_store %arg6[%c0_11, %c0_12], %12 {strides = array<i32>} : memref<8x128xf32, #tpu.memory_space<vmem>>, vector<8x128xf32>,
    return
  }
  func.func @transform_0(%arg0: i32) -> (i32, i32) {
    %c0_i32 = arith.constant 0 : i32
    %c0_i32_0 = arith.constant 0 : i32
    return %arg0, %c0_i32 : i32, i32
  }
  func.func @transform_1(%arg0: i32) -> (i32, i32) {
    %c0_i32 = arith.constant 0 : i32
    %c0_i32_0 = arith.constant 0 : i32
    %c0_i32_1 = arith.constant 0 : i32
    return %c0_i32, %c0_i32_0 : i32, i32
  }
  func.func @transform_2(%arg0: i32) -> (i32, i32) {
    %c0_i32 = arith.constant 0 : i32
    %c0_i32_0 = arith.constant 0 : i32
    %c0_i32_1 = arith.constant 0 : i32
    return %c0_i32, %c0_i32_0 : i32, i32
  }
  func.func @transform_3(%arg0: i32) -> (i32, i32) {
    %c0_i32 = arith.constant 0 : i32
    %c0_i32_0 = arith.constant 0 : i32
    %c0_i32_1 = arith.constant 0 : i32
    return %c0_i32, %c0_i32_0 : i32, i32
  }
  func.func @transform_4(%arg0: i32) -> (i32, i32) {
    %c0_i32 = arith.constant 0 : i32
    %c0_i32_0 = arith.constant 0 : i32
    %c0_i32_1 = arith.constant 0 : i32
    return %c0_i32, %c0_i32_0 : i32, i32
  }
  func.func @transform_5(%arg0: i32) -> (i32, i32) {
    %c0_i32 = arith.constant 0 : i32
    %c0_i32_0 = arith.constant 0 : i32
    return %arg0, %c0_i32 : i32, i32
  }
}

</mosaic_0001>

<llo_original>
// kernel: mlp_forward.1
$region0: #{mlp_forward.1}
  #allocation0 [shape = 'u32[]', space=smem, size = 0x4, offset = 0x4, fixed_abs, tag = 'smem constant byte address 0x4 - core index']
  #allocation1 [shape = 'u32[144,128]{1,0:T(1,128)}', space=vmem, size = 0x12000, scoped, tag = 'internal scratch']
  %s0 = inlined_call_operand.vmem [shape: f32[16,896], index: 0, kind: input, shape index: {}]
  %s1 = inlined_call_operand.vmem [shape: f32[896,128], index: 1, kind: input, shape index: {}]
  %s2 = inlined_call_operand.vmem [shape: f32[1,128], index: 2, kind: input, shape index: {}]
  %s3 = inlined_call_operand.vmem [shape: f32[128,128], index: 3, kind: input, shape index: {}]
  %s4 = inlined_call_operand.vmem [shape: f32[1,128], index: 4, kind: input, shape index: {}]
  %s5 = inlined_call_operand.hbm [shape: f32[16,128], index: 5, kind: output, shape index: {}]
  %s6 = sld [smem:[#allocation0]]
  $region53: #{mlp_forward.1} parent=0
    _
  %s8 = ssub.s32 1, %s6
  %s9 = scalar_select 0, %s8, %s6
  $region1: #{mlp_forward.1} parent=0
    #allocation2 [shape = 'u8[8192]{0}', space=vmem, size = 0x2000, scoped, tag = 'output window, operand 0']
    #allocation3 [shape = 's32[2]{0}', space=sflag, size = 0x8, scoped, tag = 'scoped memory for mlp_forward.1']
    %10 = vsyncpa [#allocation3], 0
    %s11 = scalar_lea.sflag [#allocation3], 1
    %12 = vsyncpa %s11, 0
    loop: start=0, step=1, limit=4
    $region2: #{mlp_forward.1} parent=1 // loop_pre_header
      _
    $region3: #{mlp_forward.1} parent=1 // loop_header
      %s14 = sphi 0, %s18
      %p15 = scmp.ge.s32.totalorder %s14, 4
      %s24 = sphi 0, %s26
      %s27 = sphi 0, %s24
      %s28 = sphi 0, %s27
      %s44 = sphi 0, %s28
      %s48 = sphi 0, %s48
      %s50 = sphi 0, %s48
      %s51 = sphi 0, %s50
      %s65 = sphi 0, %s51
      %s69 = sphi 0, %s69
      %s71 = sphi 0, %s69
      %s72 = sphi 0, %s71
      %s86 = sphi 0, %s72
      %s90 = sphi 0, %s90
      %s92 = sphi 0, %s90
      %s93 = sphi 0, %s92
      %s107 = sphi 0, %s93
      %s111 = sphi 0, %s111
      %s113 = sphi 0, %s111
      %s114 = sphi 0, %s113
      %s128 = sphi 0, %s114
      %s134 = sphi 0, %s136
      %s137 = sphi 0, %s134
      %s138 = sphi 0, %s137
      %s154 = sphi 0, %s138
    $region4: #{mlp_forward.1} parent=1 // loop_header_branch
      %17 = sbr.rel (%p15) target = $region8
    $region5: #{mlp_forward.1} parent=1 // loop_body
      %s19 = ssub.s32 %s14, 1
      %s20 = ssub.s32 %s14, 2
      %s21 = sadd.s32 %s14, 1
      %s22 = ssub.s32 %s14, %s21
      %p23 = scmp.eq.s32.totalorder %s22, 0
      %s25 = sadd.s32 %s24, 1
      %s26 = scalar_select %p23, %s24, %s25
      %p29 = pneg %p23
      %p30 = scmp.eq.s32.totalorder %s14, 1
      %p31 = por %p29, %p30
      %p32 = scmp.ne.s32.totalorder %s24, %s27
      %p33 = scmp.eq.s32.totalorder %s14, 0
      %p34 = por %p32, %p33
      %p35 = scmp.ne.s32.totalorder %s24, %s27
      %p36 = scmp.eq.s32.totalorder %s19, 1
      %p37 = por %p35, %p36
      %p38 = scmp.ne.s32.totalorder %s27, %s28
      %p39 = scmp.eq.s32.totalorder %s19, 0
      %p40 = por %p38, %p39
      %p41 = scmp.ne.s32.totalorder %s27, %s28
      %p42 = scmp.eq.s32.totalorder %s20, 1
      %p43 = por %p41, %p42
      %p45 = scmp.ne.s32.totalorder %s28, %s44
      %p46 = scmp.eq.s32.totalorder %s20, 0
      %p47 = por %p45, %p46
      %s49 = sadd.s32 %s48, 1
      %p52 = scmp.eq.s32.totalorder %s14, 1
      %p53 = scmp.ne.s32.totalorder %s48, %s50
      %p54 = scmp.eq.s32.totalorder %s14, 0
      %p55 = por %p53, %p54
      %p56 = scmp.ne.s32.totalorder %s48, %s50
      %p57 = scmp.eq.s32.totalorder %s19, 1
      %p58 = por %p56, %p57
      %p59 = scmp.ne.s32.totalorder %s50, %s51
      %p60 = scmp.eq.s32.totalorder %s19, 0
      %p61 = por %p59, %p60
      %p62 = scmp.ne.s32.totalorder %s50, %s51
      %p63 = scmp.eq.s32.totalorder %s20, 1
      %p64 = por %p62, %p63
      %p66 = scmp.ne.s32.totalorder %s51, %s65
      %p67 = scmp.eq.s32.totalorder %s20, 0
      %p68 = por %p66, %p67
      %s70 = sadd.s32 %s69, 1
      %p73 = scmp.eq.s32.totalorder %s14, 1
      %p74 = scmp.ne.s32.totalorder %s69, %s71
      %p75 = scmp.eq.s32.totalorder %s14, 0
      %p76 = por %p74, %p75
      %p77 = scmp.ne.s32.totalorder %s69, %s71
      %p78 = scmp.eq.s32.totalorder %s19, 1
      %p79 = por %p77, %p78
      %p80 = scmp.ne.s32.totalorder %s71, %s72
      %p81 = scmp.eq.s32.totalorder %s19, 0
      %p82 = por %p80, %p81
      %p83 = scmp.ne.s32.totalorder %s71, %s72
      %p84 = scmp.eq.s32.totalorder %s20, 1
      %p85 = por %p83, %p84
      %p87 = scmp.ne.s32.totalorder %s72, %s86
      %p88 = scmp.eq.s32.totalorder %s20, 0
      %p89 = por %p87, %p88
      %s91 = sadd.s32 %s90, 1
      %p94 = scmp.eq.s32.totalorder %s14, 1
      %p95 = scmp.ne.s32.totalorder %s90, %s92
      %p96 = scmp.eq.s32.totalorder %s14, 0
      %p97 = por %p95, %p96
      %p98 = scmp.ne.s32.totalorder %s90, %s92
      %p99 = scmp.eq.s32.totalorder %s19, 1
      %p100 = por %p98, %p99
      %p101 = scmp.ne.s32.totalorder %s92, %s93
      %p102 = scmp.eq.s32.totalorder %s19, 0
      %p103 = por %p101, %p102
      %p104 = scmp.ne.s32.totalorder %s92, %s93
      %p105 = scmp.eq.s32.totalorder %s20, 1
      %p106 = por %p104, %p105
      %p108 = scmp.ne.s32.totalorder %s93, %s107
      %p109 = scmp.eq.s32.totalorder %s20, 0
      %p110 = por %p108, %p109
      %s112 = sadd.s32 %s111, 1
      %p115 = scmp.eq.s32.totalorder %s14, 1
      %p116 = scmp.ne.s32.totalorder %s111, %s113
      %p117 = scmp.eq.s32.totalorder %s14, 0
      %p118 = por %p116, %p117
      %p119 = scmp.ne.s32.totalorder %s111, %s113
      %p120 = scmp.eq.s32.totalorder %s19, 1
      %p121 = por %p119, %p120
      %p122 = scmp.ne.s32.totalorder %s113, %s114
      %p123 = scmp.eq.s32.totalorder %s19, 0
      %p124 = por %p122, %p123
      %p125 = scmp.ne.s32.totalorder %s113, %s114
      %p126 = scmp.eq.s32.totalorder %s20, 1
      %p127 = por %p125, %p126
      %p129 = scmp.ne.s32.totalorder %s114, %s128
      %p130 = scmp.eq.s32.totalorder %s20, 0
      %p131 = por %p129, %p130
      %s132 = ssub.s32 %s14, %s21
      %p133 = scmp.eq.s32.totalorder %s132, 0
      %s135 = sadd.s32 %s134, 1
      %s136 = scalar_select %p133, %s134, %s135
      %p139 = pneg %p133
      %p140 = scmp.eq.s32.totalorder %s14, 1
      %p141 = por %p139, %p140
      %p142 = scmp.ne.s32.totalorder %s134, %s137
      %p143 = scmp.eq.s32.totalorder %s14, 0
      %p144 = por %p142, %p143
      %p145 = scmp.ne.s32.totalorder %s134, %s137
      %p146 = scmp.eq.s32.totalorder %s19, 1
      %p147 = por %p145, %p146
      %p148 = scmp.ne.s32.totalorder %s137, %s138
      %p149 = scmp.eq.s32.totalorder %s19, 0
      %p150 = por %p148, %p149
      %p151 = scmp.ne.s32.totalorder %s137, %s138
      %p152 = scmp.eq.s32.totalorder %s20, 1
      %p153 = por %p151, %p152
      %p155 = scmp.ne.s32.totalorder %s138, %s154
      %p156 = scmp.eq.s32.totalorder %s20, 0
      %p157 = por %p155, %p156
      %p158 = scmp.le.s32.totalorder 1, %s14
      %p159 = scmp.lt.s32.totalorder %s14, 3
      %p160 = pnand %p158, %p159
      %p161 = pneg %p160
      // Predicated region
      $region9: #{mlp_forward.1} parent=5 // pred_check
        _
      $region10: #{mlp_forward.1} parent=5 // pred_check_branch
        %163 = sbr.rel (%p160) target = $region12
      $region11: #{mlp_forward.1} parent=5 // pred_region
        %s164 = ssub.s32 %s14, 1
        // Predicated region
        $region13: #{mlp_forward.1} parent=11 // pred_check
          %p165 = pneg %p61
        $region14: #{mlp_forward.1} parent=11 // pred_check_branch
          %167 = sbr.rel (%p165) target = $region16
        $region15: #{mlp_forward.1} parent=11 // pred_region
          _
        $region16: #{mlp_forward.1} parent=11 // pred_fallthru
          _
        // Predicated region
        $region17: #{mlp_forward.1} parent=11 // pred_check
          %p168 = pneg %p82
        $region18: #{mlp_forward.1} parent=11 // pred_check_branch
          %170 = sbr.rel (%p168) target = $region20
        $region19: #{mlp_forward.1} parent=11 // pred_region
          _
        $region20: #{mlp_forward.1} parent=11 // pred_fallthru
          _
        // Predicated region
        $region21: #{mlp_forward.1} parent=11 // pred_check
          %p171 = pneg %p103
        $region22: #{mlp_forward.1} parent=11 // pred_check_branch
          %173 = sbr.rel (%p171) target = $region24
        $region23: #{mlp_forward.1} parent=11 // pred_region
          _
        $region24: #{mlp_forward.1} parent=11 // pred_fallthru
          _
        // Predicated region
        $region25: #{mlp_forward.1} parent=11 // pred_check
          %p174 = pneg %p124
        $region26: #{mlp_forward.1} parent=11 // pred_check_branch
          %176 = sbr.rel (%p174) target = $region28
        $region27: #{mlp_forward.1} parent=11 // pred_region
          _
        $region28: #{mlp_forward.1} parent=11 // pred_fallthru
          _
      $region12: #{mlp_forward.1} parent=5 // pred_fallthru
        _
      %p177 = scmp.lt.s32.totalorder %s14, 2
      // Predicated region
      $region29: #{mlp_forward.1} parent=5 // pred_check
        %p178 = pneg %p177
      $region30: #{mlp_forward.1} parent=5 // pred_check_branch
        %180 = sbr.rel (%p178) target = $region32
      $region31: #{mlp_forward.1} parent=5 // pred_region
        // Predicated region
        $region33: #{mlp_forward.1} parent=31 // pred_check
          %p181 = pneg %p34
        $region34: #{mlp_forward.1} parent=31 // pred_check_branch
          %183 = sbr.rel (%p181) target = $region36
        $region35: #{mlp_forward.1} parent=31 // pred_region
          %p184 = scmp.lt.s32.totalorder %s14, 1
          %s185 = scalar_select %p184, %s14, 1
          %s186 = smul.addr %s185, 7
          %s187 = smul.addr %s186, 8
          %s188 = scalar_lea.vmem %s0, %s187
        $region36: #{mlp_forward.1} parent=31 // pred_fallthru
          _
      $region32: #{mlp_forward.1} parent=5 // pred_fallthru
        _
      %p189 = scmp.le.s32.totalorder 1, %s14
      %p190 = scmp.lt.s32.totalorder %s14, 3
      %p191 = pnand %p189, %p190
      %p192 = pneg %p191
      // Predicated region
      $region37: #{mlp_forward.1} parent=5 // pred_check
        _
      $region38: #{mlp_forward.1} parent=5 // pred_check_branch
        %194 = sbr.rel (%p191) target = $region40
      $region39: #{mlp_forward.1} parent=5 // pred_region
        %s195 = ssub.s32 %s14, 1
        %p196 = scmp.lt.s32.totalorder %s19, 1
        %s197 = scalar_select %p196, %s19, 1
        %s198 = smul.addr %s197, 7
        %s199 = smul.addr %s198, 8
        %s200 = scalar_lea.vmem %s0, %s199
        %p201 = pneg %p40
        %p202 = pneg %p37
        %p203 = pneg %p61
        %p204 = pneg %p58
        %p205 = pneg %p82
        %p206 = pneg %p79
        %p207 = pneg %p103
        %p208 = pneg %p100
        %p209 = pneg %p124
        %p210 = pneg %p121
        %p211 = pneg %p150
        %p212 = pneg %p147
        %s213 = sand.u32 %s137, 1
        %s214 = scalar_lea.sflag [#allocation3], %s213
        %s215 = sand.u32 %s137, 1
        %s216 = smul.addr %s215, 8
        %s217 = scalar_lea.vmem [#allocation2], %s216
        %p218 = scmp.lt.s32.totalorder %s19, 1
        %s219 = scalar_select %p218, %s19, 1
        %s220 = smul.addr %s219, 7
        %s221 = smul.addr %s220, 8
        %s222 = scalar_lea.vmem %s0, %s221
        %v223 = vld [vmem:[%s222] sm:$0xff]
        %v224 = vld [vmem:[%s222 + $0x8] sm:$0xff]
        %v225 = vld [vmem:[%s222 + $0x10] sm:$0xff]
        %v226 = vld [vmem:[%s222 + $0x18] sm:$0xff]
        %v227 = vld [vmem:[%s222 + $0x20] sm:$0xff]
        %v228 = vld [vmem:[%s222 + $0x28] sm:$0xff]
        %v229 = vld [vmem:[%s222 + $0x30] sm:$0xff]
        %v230 = vld [vmem:[%s1] sm:$0xff]
        %v231 = vld [vmem:[%s1 + $0x8] sm:$0xff]
        %v232 = vld [vmem:[%s1 + $0x10] sm:$0xff]
        %v233 = vld [vmem:[%s1 + $0x18] sm:$0xff]
        %v234 = vld [vmem:[%s1 + $0x20] sm:$0xff]
        %v235 = vld [vmem:[%s1 + $0x28] sm:$0xff]
        %v236 = vld [vmem:[%s1 + $0x30] sm:$0xff]
        %v237 = vld [vmem:[%s1 + $0x38] sm:$0xff]
        %v238 = vld [vmem:[%s1 + $0x40] sm:$0xff]
        %v239 = vld [vmem:[%s1 + $0x48] sm:$0xff]
        %v240 = vld [vmem:[%s1 + $0x50] sm:$0xff]
        %v241 = vld [vmem:[%s1 + $0x58] sm:$0xff]
        %v242 = vld [vmem:[%s1 + $0x60] sm:$0xff]
        %v243 = vld [vmem:[%s1 + $0x68] sm:$0xff]
        %v244 = vld [vmem:[%s1 + $0x70] sm:$0xff]
        %v245 = vld [vmem:[%s1 + $0x78] sm:$0xff]
        %v246 = vld [vmem:[%s1 + $0x80] sm:$0xff]
        %v247 = vld [vmem:[%s1 + $0x88] sm:$0xff]
        %v248 = vld [vmem:[%s1 + $0x90] sm:$0xff]
        %v249 = vld [vmem:[%s1 + $0x98] sm:$0xff]
        %v250 = vld [vmem:[%s1 + $0xa0] sm:$0xff]
        %v251 = vld [vmem:[%s1 + $0xa8] sm:$0xff]
        %v252 = vld [vmem:[%s1 + $0xb0] sm:$0xff]
        %v253 = vld [vmem:[%s1 + $0xb8] sm:$0xff]
        %v254 = vld [vmem:[%s1 + $0xc0] sm:$0xff]
        %v255 = vld [vmem:[%s1 + $0xc8] sm:$0xff]
        %v256 = vld [vmem:[%s1 + $0xd0] sm:$0xff]
        %v257 = vld [vmem:[%s1 + $0xd8] sm:$0xff]
        %v258 = vld [vmem:[%s1 + $0xe0] sm:$0xff]
        %v259 = vld [vmem:[%s1 + $0xe8] sm:$0xff]
        %v260 = vld [vmem:[%s1 + $0xf0] sm:$0xff]
        %v261 = vld [vmem:[%s1 + $0xf8] sm:$0xff]
        %v262 = vld [vmem:[%s1 + $0x100] sm:$0xff]
        %v263 = vld [vmem:[%s1 + $0x108] sm:$0xff]
        %v264 = vld [vmem:[%s1 + $0x110] sm:$0xff]
        %v265 = vld [vmem:[%s1 + $0x118] sm:$0xff]
        %v266 = vld [vmem:[%s1 + $0x120] sm:$0xff]
        %v267 = vld [vmem:[%s1 + $0x128] sm:$0xff]
        %v268 = vld [vmem:[%s1 + $0x130] sm:$0xff]
        %v269 = vld [vmem:[%s1 + $0x138] sm:$0xff]
        %v270 = vld [vmem:[%s1 + $0x140] sm:$0xff]
        %v271 = vld [vmem:[%s1 + $0x148] sm:$0xff]
        %v272 = vld [vmem:[%s1 + $0x150] sm:$0xff]
        %v273 = vld [vmem:[%s1 + $0x158] sm:$0xff]
        %v274 = vld [vmem:[%s1 + $0x160] sm:$0xff]
        %v275 = vld [vmem:[%s1 + $0x168] sm:$0xff]
        %v276 = vld [vmem:[%s1 + $0x170] sm:$0xff]
        %v277 = vld [vmem:[%s1 + $0x178] sm:$0xff]
        %v278 = vld [vmem:[%s1 + $0x180] sm:$0xff]
        %v279 = vld [vmem:[%s1 + $0x188] sm:$0xff]
        %v280 = vld [vmem:[%s1 + $0x190] sm:$0xff]
        %v281 = vld [vmem:[%s1 + $0x198] sm:$0xff]
        %v282 = vld [vmem:[%s1 + $0x1a0] sm:$0xff]
        %v283 = vld [vmem:[%s1 + $0x1a8] sm:$0xff]
        %v284 = vld [vmem:[%s1 + $0x1b0] sm:$0xff]
        %v285 = vld [vmem:[%s1 + $0x1b8] sm:$0xff]
        %v286 = vld [vmem:[%s1 + $0x1c0] sm:$0xff]
        %v287 = vld [vmem:[%s1 + $0x1c8] sm:$0xff]
        %v288 = vld [vmem:[%s1 + $0x1d0] sm:$0xff]
        %v289 = vld [vmem:[%s1 + $0x1d8] sm:$0xff]
        %v290 = vld [vmem:[%s1 + $0x1e0] sm:$0xff]
        %v291 = vld [vmem:[%s1 + $0x1e8] sm:$0xff]
        %v292 = vld [vmem:[%s1 + $0x1f0] sm:$0xff]
        %v293 = vld [vmem:[%s1 + $0x1f8] sm:$0xff]
        %v294 = vld [vmem:[%s1 + $0x200] sm:$0xff]
        %v295 = vld [vmem:[%s1 + $0x208] sm:$0xff]
        %v296 = vld [vmem:[%s1 + $0x210] sm:$0xff]
        %v297 = vld [vmem:[%s1 + $0x218] sm:$0xff]
        %v298 = vld [vmem:[%s1 + $0x220] sm:$0xff]
        %v299 = vld [vmem:[%s1 + $0x228] sm:$0xff]
        %v300 = vld [vmem:[%s1 + $0x230] sm:$0xff]
        %v301 = vld [vmem:[%s1 + $0x238] sm:$0xff]
        %v302 = vld [vmem:[%s1 + $0x240] sm:$0xff]
        %v303 = vld [vmem:[%s1 + $0x248] sm:$0xff]
        %v304 = vld [vmem:[%s1 + $0x250] sm:$0xff]
        %v305 = vld [vmem:[%s1 + $0x258] sm:$0xff]
        %v306 = vld [vmem:[%s1 + $0x260] sm:$0xff]
        %v307 = vld [vmem:[%s1 + $0x268] sm:$0xff]
        %v308 = vld [vmem:[%s1 + $0x270] sm:$0xff]
        %v309 = vld [vmem:[%s1 + $0x278] sm:$0xff]
        %v310 = vld [vmem:[%s1 + $0x280] sm:$0xff]
        %v311 = vld [vmem:[%s1 + $0x288] sm:$0xff]
        %v312 = vld [vmem:[%s1 + $0x290] sm:$0xff]
        %v313 = vld [vmem:[%s1 + $0x298] sm:$0xff]
        %v314 = vld [vmem:[%s1 + $0x2a0] sm:$0xff]
        %v315 = vld [vmem:[%s1 + $0x2a8] sm:$0xff]
        %v316 = vld [vmem:[%s1 + $0x2b0] sm:$0xff]
        %v317 = vld [vmem:[%s1 + $0x2b8] sm:$0xff]
        %v318 = vld [vmem:[%s1 + $0x2c0] sm:$0xff]
        %v319 = vld [vmem:[%s1 + $0x2c8] sm:$0xff]
        %v320 = vld [vmem:[%s1 + $0x2d0] sm:$0xff]
        %v321 = vld [vmem:[%s1 + $0x2d8] sm:$0xff]
        %v322 = vld [vmem:[%s1 + $0x2e0] sm:$0xff]
        %v323 = vld [vmem:[%s1 + $0x2e8] sm:$0xff]
        %v324 = vld [vmem:[%s1 + $0x2f0] sm:$0xff]
        %v325 = vld [vmem:[%s1 + $0x2f8] sm:$0xff]
        %v326 = vld [vmem:[%s1 + $0x300] sm:$0xff]
        %v327 = vld [vmem:[%s1 + $0x308] sm:$0xff]
        %v328 = vld [vmem:[%s1 + $0x310] sm:$0xff]
        %v329 = vld [vmem:[%s1 + $0x318] sm:$0xff]
        %v330 = vld [vmem:[%s1 + $0x320] sm:$0xff]
        %v331 = vld [vmem:[%s1 + $0x328] sm:$0xff]
        %v332 = vld [vmem:[%s1 + $0x330] sm:$0xff]
        %v333 = vld [vmem:[%s1 + $0x338] sm:$0xff]
        %v334 = vld [vmem:[%s1 + $0x340] sm:$0xff]
        %v335 = vld [vmem:[%s1 + $0x348] sm:$0xff]
        %v336 = vld [vmem:[%s1 + $0x350] sm:$0xff]
        %v337 = vld [vmem:[%s1 + $0x358] sm:$0xff]
        %v338 = vld [vmem:[%s1 + $0x360] sm:$0xff]
        %v339 = vld [vmem:[%s1 + $0x368] sm:$0xff]
        %v340 = vld [vmem:[%s1 + $0x370] sm:$0xff]
        %v341 = vld [vmem:[%s1 + $0x378] sm:$0xff]
        %v342 = vld [vmem:[%s2] sm:$0x1]
        %v344 = vlaneseq
        %v345 = vshrl.u32 %v344, 7
        %v346 = vsub.s32 0, %v345
        %v347 = vrot.slane %v342, %v346
        %349 = vmatprep.subr.mxu0 0.0
        %350 = vmatpush1.msra.mxu0 %v230
        %351 = vmatprep.subr.mxu0 0.0
        %352 = vmatpush1.msra.mxu0 %v231
        %353 = vmatprep.subr.mxu0 0.0
        %354 = vmatpush1.msra.mxu0 %v232
        %355 = vmatprep.subr.mxu0 0.0
        %356 = vmatpush1.msra.mxu0 %v233
        %357 = vmatprep.subr.mxu0 0.0
        %358 = vmatpush1.msra.mxu0 %v234
        %359 = vmatprep.subr.mxu0 0.0
        %360 = vmatpush1.msra.mxu0 %v235
        %361 = vmatprep.subr.mxu0 0.0
        %362 = vmatpush1.msra.mxu0 %v236
        %363 = vmatprep.subr.mxu0 0.0
        %364 = vmatpush1.msra.mxu0 %v237
        %365 = vmatprep.subr.mxu0 0.0
        %366 = vmatpush1.msra.mxu0 %v238
        %367 = vmatprep.subr.mxu0 0.0
        %368 = vmatpush1.msra.mxu0 %v239
        %369 = vmatprep.subr.mxu0 0.0
        %370 = vmatpush1.msra.mxu0 %v240
        %371 = vmatprep.subr.mxu0 0.0
        %372 = vmatpush1.msra.mxu0 %v241
        %373 = vmatprep.subr.mxu0 0.0
        %374 = vmatpush1.msra.mxu0 %v242
        %375 = vmatprep.subr.mxu0 0.0
        %376 = vmatpush1.msra.mxu0 %v243
        %377 = vmatprep.subr.mxu0 0.0
        %378 = vmatpush1.msra.mxu0 %v244
        %379 = vmatprep.subr.mxu0 0.0
        %380 = vmatpush1.msra.mxu0 %v245
        %381 = vmatprep.subr.mxu0 0.0
        %382 = vmatpush1.msra.mxu0 %v246
        %383 = vmatprep.subr.mxu0 0.0
        %384 = vmatpush1.msra.mxu0 %v247
        %385 = vmatprep.subr.mxu0 0.0
        %386 = vmatpush1.msra.mxu0 %v248
        %387 = vmatprep.subr.mxu0 0.0
        %388 = vmatpush1.msra.mxu0 %v249
        %389 = vmatprep.subr.mxu0 0.0
        %390 = vmatpush1.msra.mxu0 %v250
        %391 = vmatprep.subr.mxu0 0.0
        %392 = vmatpush1.msra.mxu0 %v251
        %393 = vmatprep.subr.mxu0 0.0
        %394 = vmatpush1.msra.mxu0 %v252
        %395 = vmatprep.subr.mxu0 0.0
        %396 = vmatpush1.msra.mxu0 %v253
        %397 = vmatprep.subr.mxu0 0.0
        %398 = vmatpush1.msra.mxu0 %v254
        %399 = vmatprep.subr.mxu0 0.0
        %400 = vmatpush1.msra.mxu0 %v255
        %401 = vmatprep.subr.mxu0 0.0
        %402 = vmatpush1.msra.mxu0 %v256
        %403 = vmatprep.subr.mxu0 0.0
        %404 = vmatpush1.msra.mxu0 %v257
        %405 = vmatprep.subr.mxu0 0.0
        %406 = vmatpush1.msra.mxu0 %v258
        %407 = vmatprep.subr.mxu0 0.0
        %408 = vmatpush1.msra.mxu0 %v259
        %409 = vmatprep.subr.mxu0 0.0
        %410 = vmatpush1.msra.mxu0 %v260
        %411 = vmatprep.subr.mxu0 0.0
        %412 = vmatpush1.msra.mxu0 %v261
        %413 = vmatprep.mubr.f32.mxu0 %v224
        %414 = vmatmul.mubr.f32.gmra.mrb[0].mxu0 %v223
        %v415 = vpop.f32.mrb[0].mxu0
        %v416 = vadd.f32 %v347, %v415
        %v417 = vpop.f32.mrb[0].mxu0
        %418 = vdwg.mxu0
        %419 = vmatprep.subr.mxu0 0.0
        %420 = vmatpush1.msra.mxu0 %v262
        %421 = vmatprep.subr.mxu0 0.0
        %422 = vmatpush1.msra.mxu0 %v263
        %423 = vmatprep.subr.mxu0 0.0
        %424 = vmatpush1.msra.mxu0 %v264
        %425 = vmatprep.subr.mxu0 0.0
        %426 = vmatpush1.msra.mxu0 %v265
        %427 = vmatprep.subr.mxu0 0.0
        %428 = vmatpush1.msra.mxu0 %v266
        %429 = vmatprep.subr.mxu0 0.0
        %430 = vmatpush1.msra.mxu0 %v267
        %431 = vmatprep.subr.mxu0 0.0
        %432 = vmatpush1.msra.mxu0 %v268
        %433 = vmatprep.subr.mxu0 0.0
        %434 = vmatpush1.msra.mxu0 %v269
        %435 = vmatprep.subr.mxu0 0.0
        %436 = vmatpush1.msra.mxu0 %v270
        %437 = vmatprep.subr.mxu0 0.0
        %438 = vmatpush1.msra.mxu0 %v271
        %439 = vmatprep.subr.mxu0 0.0
        %440 = vmatpush1.msra.mxu0 %v272
        %441 = vmatprep.subr.mxu0 0.0
        %442 = vmatpush1.msra.mxu0 %v273
        %443 = vmatprep.subr.mxu0 0.0
        %444 = vmatpush1.msra.mxu0 %v274
        %445 = vmatprep.subr.mxu0 0.0
        %446 = vmatpush1.msra.mxu0 %v275
        %447 = vmatprep.subr.mxu0 0.0
        %448 = vmatpush1.msra.mxu0 %v276
        %449 = vmatprep.subr.mxu0 0.0
        %450 = vmatpush1.msra.mxu0 %v277
        %451 = vmatprep.subr.mxu0 0.0
        %452 = vmatpush1.msra.mxu0 %v278
        %453 = vmatprep.subr.mxu0 0.0
        %454 = vmatpush1.msra.mxu0 %v279
        %455 = vmatprep.subr.mxu0 0.0
        %456 = vmatpush1.msra.mxu0 %v280
        %457 = vmatprep.subr.mxu0 0.0
        %458 = vmatpush1.msra.mxu0 %v281
        %459 = vmatprep.subr.mxu0 0.0
        %460 = vmatpush1.msra.mxu0 %v282
        %461 = vmatprep.subr.mxu0 0.0
        %462 = vmatpush1.msra.mxu0 %v283
        %463 = vmatprep.subr.mxu0 0.0
        %464 = vmatpush1.msra.mxu0 %v284
        %465 = vmatprep.subr.mxu0 0.0
        %466 = vmatpush1.msra.mxu0 %v285
        %467 = vmatprep.subr.mxu0 0.0
        %468 = vmatpush1.msra.mxu0 %v286
        %469 = vmatprep.subr.mxu0 0.0
        %470 = vmatpush1.msra.mxu0 %v287
        %471 = vmatprep.subr.mxu0 0.0
        %472 = vmatpush1.msra.mxu0 %v288
        %473 = vmatprep.subr.mxu0 0.0
        %474 = vmatpush1.msra.mxu0 %v289
        %475 = vmatprep.subr.mxu0 0.0
        %476 = vmatpush1.msra.mxu0 %v290
        %477 = vmatprep.subr.mxu0 0.0
        %478 = vmatpush1.msra.mxu0 %v291
        %479 = vmatprep.subr.mxu0 0.0
        %480 = vmatpush1.msra.mxu0 %v292
        %481 = vmatprep.subr.mxu0 0.0
        %482 = vmatpush1.msra.mxu0 %v293
        %483 = vmatprep.mubr.f32.mxu0 %v226
        %484 = vmatmul.mubr.f32.gmra.mrb[0].mxu0 %v225
        %v485 = vpop.f32.mrb[0].mxu0
        %v486 = vadd.f32 %v416, %v485
        %v487 = vpop.f32.mrb[0].mxu0
        %488 = vdwg.mxu0
        %489 = vmatprep.subr.mxu0 0.0
        %490 = vmatpush1.msra.mxu0 %v294
        %491 = vmatprep.subr.mxu0 0.0
        %492 = vmatpush1.msra.mxu0 %v295
        %493 = vmatprep.subr.mxu0 0.0
        %494 = vmatpush1.msra.mxu0 %v296
        %495 = vmatprep.subr.mxu0 0.0
        %496 = vmatpush1.msra.mxu0 %v297
        %497 = vmatprep.subr.mxu0 0.0
        %498 = vmatpush1.msra.mxu0 %v298
        %499 = vmatprep.subr.mxu0 0.0
        %500 = vmatpush1.msra.mxu0 %v299
        %501 = vmatprep.subr.mxu0 0.0
        %502 = vmatpush1.msra.mxu0 %v300
        %503 = vmatprep.subr.mxu0 0.0
        %504 = vmatpush1.msra.mxu0 %v301
        %505 = vmatprep.subr.mxu0 0.0
        %506 = vmatpush1.msra.mxu0 %v302
        %507 = vmatprep.subr.mxu0 0.0
        %508 = vmatpush1.msra.mxu0 %v303
        %509 = vmatprep.subr.mxu0 0.0
        %510 = vmatpush1.msra.mxu0 %v304
        %511 = vmatprep.subr.mxu0 0.0
        %512 = vmatpush1.msra.mxu0 %v305
        %513 = vmatprep.subr.mxu0 0.0
        %514 = vmatpush1.msra.mxu0 %v306
        %515 = vmatprep.subr.mxu0 0.0
        %516 = vmatpush1.msra.mxu0 %v307
        %517 = vmatprep.subr.mxu0 0.0
        %518 = vmatpush1.msra.mxu0 %v308
        %519 = vmatprep.subr.mxu0 0.0
        %520 = vmatpush1.msra.mxu0 %v309
        %521 = vmatprep.subr.mxu0 0.0
        %522 = vmatpush1.msra.mxu0 %v310
        %523 = vmatprep.subr.mxu0 0.0
        %524 = vmatpush1.msra.mxu0 %v311
        %525 = vmatprep.subr.mxu0 0.0
        %526 = vmatpush1.msra.mxu0 %v312
        %527 = vmatprep.subr.mxu0 0.0
        %528 = vmatpush1.msra.mxu0 %v313
        %529 = vmatprep.subr.mxu0 0.0
        %530 = vmatpush1.msra.mxu0 %v314
        %531 = vmatprep.subr.mxu0 0.0
        %532 = vmatpush1.msra.mxu0 %v315
        %533 = vmatprep.subr.mxu0 0.0
        %534 = vmatpush1.msra.mxu0 %v316
        %535 = vmatprep.subr.mxu0 0.0
        %536 = vmatpush1.msra.mxu0 %v317
        %537 = vmatprep.subr.mxu0 0.0
        %538 = vmatpush1.msra.mxu0 %v318
        %539 = vmatprep.subr.mxu0 0.0
        %540 = vmatpush1.msra.mxu0 %v319
        %541 = vmatprep.subr.mxu0 0.0
        %542 = vmatpush1.msra.mxu0 %v320
        %543 = vmatprep.subr.mxu0 0.0
        %544 = vmatpush1.msra.mxu0 %v321
        %545 = vmatprep.subr.mxu0 0.0
        %546 = vmatpush1.msra.mxu0 %v322
        %547 = vmatprep.subr.mxu0 0.0
        %548 = vmatpush1.msra.mxu0 %v323
        %549 = vmatprep.subr.mxu0 0.0
        %550 = vmatpush1.msra.mxu0 %v324
        %551 = vmatprep.subr.mxu0 0.0
        %552 = vmatpush1.msra.mxu0 %v325
        %553 = vmatprep.mubr.f32.mxu0 %v228
        %554 = vmatmul.mubr.f32.gmra.mrb[0].mxu0 %v227
        %v555 = vpop.f32.mrb[0].mxu0
        %v556 = vadd.f32 %v486, %v555
        %v557 = vpop.f32.mrb[0].mxu0
        %558 = vdwg.mxu0
        %559 = vmatprep.subr.mxu0 0.0
        %560 = vmatpush1.msra.mxu0 %v326
        %561 = vmatprep.subr.mxu0 0.0
        %562 = vmatpush1.msra.mxu0 %v327
        %563 = vmatprep.subr.mxu0 0.0
        %564 = vmatpush1.msra.mxu0 %v328
        %565 = vmatprep.subr.mxu0 0.0
        %566 = vmatpush1.msra.mxu0 %v329
        %567 = vmatprep.subr.mxu0 0.0
        %568 = vmatpush1.msra.mxu0 %v330
        %569 = vmatprep.subr.mxu0 0.0
        %570 = vmatpush1.msra.mxu0 %v331
        %571 = vmatprep.subr.mxu0 0.0
        %572 = vmatpush1.msra.mxu0 %v332
        %573 = vmatprep.subr.mxu0 0.0
        %574 = vmatpush1.msra.mxu0 %v333
        %575 = vmatprep.subr.mxu0 0.0
        %576 = vmatpush1.msra.mxu0 %v334
        %577 = vmatprep.subr.mxu0 0.0
        %578 = vmatpush1.msra.mxu0 %v335
        %579 = vmatprep.subr.mxu0 0.0
        %580 = vmatpush1.msra.mxu0 %v336
        %581 = vmatprep.subr.mxu0 0.0
        %582 = vmatpush1.msra.mxu0 %v337
        %583 = vmatprep.subr.mxu0 0.0
        %584 = vmatpush1.msra.mxu0 %v338
        %585 = vmatprep.subr.mxu0 0.0
        %586 = vmatpush1.msra.mxu0 %v339
        %587 = vmatprep.subr.mxu0 0.0
        %588 = vmatpush1.msra.mxu0 %v340
        %589 = vmatprep.subr.mxu0 0.0
        %590 = vmatpush1.msra.mxu0 %v341
        %591 = vmatprep.subr.mxu0 0.0
        %592 = vmatpush1.msra.mxu0 0.0
        %593 = vmatprep.subr.mxu0 0.0
        %594 = vmatpush1.msra.mxu0 0.0
        %595 = vmatprep.subr.mxu0 0.0
        %596 = vmatpush1.msra.mxu0 0.0
        %597 = vmatprep.subr.mxu0 0.0
        %598 = vmatpush1.msra.mxu0 0.0
        %599 = vmatprep.subr.mxu0 0.0
        %600 = vmatpush1.msra.mxu0 0.0
        %601 = vmatprep.subr.mxu0 0.0
        %602 = vmatpush1.msra.mxu0 0.0
        %603 = vmatprep.subr.mxu0 0.0
        %604 = vmatpush1.msra.mxu0 0.0
        %605 = vmatprep.subr.mxu0 0.0
        %606 = vmatpush1.msra.mxu0 0.0
        %607 = vmatprep.subr.mxu0 0.0
        %608 = vmatpush1.msra.mxu0 0.0
        %609 = vmatprep.subr.mxu0 0.0
        %610 = vmatpush1.msra.mxu0 0.0
        %611 = vmatprep.subr.mxu0 0.0
        %612 = vmatpush1.msra.mxu0 0.0
        %613 = vmatprep.subr.mxu0 0.0
        %614 = vmatpush1.msra.mxu0 0.0
        %615 = vmatprep.subr.mxu0 0.0
        %616 = vmatpush1.msra.mxu0 0.0
        %617 = vmatprep.subr.mxu0 0.0
        %618 = vmatpush1.msra.mxu0 0.0
        %619 = vmatprep.subr.mxu0 0.0
        %620 = vmatpush1.msra.mxu0 0.0
        %621 = vmatprep.subr.mxu0 0.0
        %622 = vmatpush1.msra.mxu0 0.0
        %623 = vmatprep.mubr.f32.mxu0 0.0
        %624 = vmatmul.mubr.f32.gmra.mrb[0].mxu0 %v229
        %v625 = vpop.f32.mrb[0].mxu0
        %v626 = vadd.f32 %v556, %v625
        %v627 = vpop.f32.mrb[0].mxu0
        %628 = vdwg.mxu0
        %v629 = vmax.f32 %v626, 0.0
        %v630 = vld [vmem:[%s3] sm:$0xff]
        %v631 = vld [vmem:[%s3 + $0x8] sm:$0xff]
        %v632 = vld [vmem:[%s3 + $0x10] sm:$0xff]
        %v633 = vld [vmem:[%s3 + $0x18] sm:$0xff]
        %v634 = vld [vmem:[%s3 + $0x20] sm:$0xff]
        %v635 = vld [vmem:[%s3 + $0x28] sm:$0xff]
        %v636 = vld [vmem:[%s3 + $0x30] sm:$0xff]
        %v637 = vld [vmem:[%s3 + $0x38] sm:$0xff]
        %v638 = vld [vmem:[%s3 + $0x40] sm:$0xff]
        %v639 = vld [vmem:[%s3 + $0x48] sm:$0xff]
        %v640 = vld [vmem:[%s3 + $0x50] sm:$0xff]
        %v641 = vld [vmem:[%s3 + $0x58] sm:$0xff]
        %v642 = vld [vmem:[%s3 + $0x60] sm:$0xff]
        %v643 = vld [vmem:[%s3 + $0x68] sm:$0xff]
        %v644 = vld [vmem:[%s3 + $0x70] sm:$0xff]
        %v645 = vld [vmem:[%s3 + $0x78] sm:$0xff]
        %v646 = vld [vmem:[%s4] sm:$0x1]
        %v648 = vlaneseq
        %v649 = vshrl.u32 %v648, 7
        %v650 = vsub.s32 0, %v649
        %v651 = vrot.slane %v646, %v650
        %653 = vmatprep.subr.mxu0 0.0
        %654 = vmatpush1.msra.mxu0 %v630
        %655 = vmatprep.subr.mxu0 0.0
        %656 = vmatpush1.msra.mxu0 %v631
        %657 = vmatprep.subr.mxu0 0.0
        %658 = vmatpush1.msra.mxu0 %v632
        %659 = vmatprep.subr.mxu0 0.0
        %660 = vmatpush1.msra.mxu0 %v633
        %661 = vmatprep.subr.mxu0 0.0
        %662 = vmatpush1.msra.mxu0 %v634
        %663 = vmatprep.subr.mxu0 0.0
        %664 = vmatpush1.msra.mxu0 %v635
        %665 = vmatprep.subr.mxu0 0.0
        %666 = vmatpush1.msra.mxu0 %v636
        %667 = vmatprep.subr.mxu0 0.0
        %668 = vmatpush1.msra.mxu0 %v637
        %669 = vmatprep.subr.mxu0 0.0
        %670 = vmatpush1.msra.mxu0 %v638
        %671 = vmatprep.subr.mxu0 0.0
        %672 = vmatpush1.msra.mxu0 %v639
        %673 = vmatprep.subr.mxu0 0.0
        %674 = vmatpush1.msra.mxu0 %v640
        %675 = vmatprep.subr.mxu0 0.0
        %676 = vmatpush1.msra.mxu0 %v641
        %677 = vmatprep.subr.mxu0 0.0
        %678 = vmatpush1.msra.mxu0 %v642
        %679 = vmatprep.subr.mxu0 0.0
        %680 = vmatpush1.msra.mxu0 %v643
        %681 = vmatprep.subr.mxu0 0.0
        %682 = vmatpush1.msra.mxu0 %v644
        %683 = vmatprep.subr.mxu0 0.0
        %684 = vmatpush1.msra.mxu0 %v645
        %685 = vmatprep.subr.mxu0 0.0
        %686 = vmatpush1.msra.mxu0 0.0
        %687 = vmatprep.subr.mxu0 0.0
        %688 = vmatpush1.msra.mxu0 0.0
        %689 = vmatprep.subr.mxu0 0.0
        %690 = vmatpush1.msra.mxu0 0.0
        %691 = vmatprep.subr.mxu0 0.0
        %692 = vmatpush1.msra.mxu0 0.0
        %693 = vmatprep.subr.mxu0 0.0
        %694 = vmatpush1.msra.mxu0 0.0
        %695 = vmatprep.subr.mxu0 0.0
        %696 = vmatpush1.msra.mxu0 0.0
        %697 = vmatprep.subr.mxu0 0.0
        %698 = vmatpush1.msra.mxu0 0.0
        %699 = vmatprep.subr.mxu0 0.0
        %700 = vmatpush1.msra.mxu0 0.0
        %701 = vmatprep.subr.mxu0 0.0
        %702 = vmatpush1.msra.mxu0 0.0
        %703 = vmatprep.subr.mxu0 0.0
        %704 = vmatpush1.msra.mxu0 0.0
        %705 = vmatprep.subr.mxu0 0.0
        %706 = vmatpush1.msra.mxu0 0.0
        %707 = vmatprep.subr.mxu0 0.0
        %708 = vmatpush1.msra.mxu0 0.0
        %709 = vmatprep.subr.mxu0 0.0
        %710 = vmatpush1.msra.mxu0 0.0
        %711 = vmatprep.subr.mxu0 0.0
        %712 = vmatpush1.msra.mxu0 0.0
        %713 = vmatprep.subr.mxu0 0.0
        %714 = vmatpush1.msra.mxu0 0.0
        %715 = vmatprep.subr.mxu0 0.0
        %716 = vmatpush1.msra.mxu0 0.0
        %717 = vmatprep.mubr.f32.mxu0 0.0
        %718 = vmatmul.mubr.f32.gmra.mrb[0].mxu0 %v629
        %v719 = vpop.f32.mrb[0].mxu0
        %v720 = vadd.f32 %v651, %v719
        %v721 = vpop.f32.mrb[0].mxu0
        %722 = vdwg.mxu0
        %723 = vst [vmem:[%s217] sm:$0xff] %v720
        %s724 = sand.u32 %s137, 1
        %s725 = scalar_lea.sflag [#allocation3], %s724
        %s726 = sand.u32 %s137, 1
        %s727 = smul.addr %s726, 8
        %s728 = scalar_lea.vmem [#allocation2], %s727
        // Predicated region
        $region41: #{mlp_forward.1} parent=39 // pred_check
          %p729 = pneg %p147
        $region42: #{mlp_forward.1} parent=39 // pred_check_branch
          %731 = sbr.rel (%p729) target = $region44
        $region43: #{mlp_forward.1} parent=39 // pred_region
          %s733 = ssub.s32 128, 128
          %734 = vsyncadd %s725, %s733
          %s735 = smul.addr %s19, 128
          %s736 = scalar_lea.hbm %s5, %s735
          %s738 = sshll.u32 %s728, 4
          %s739 = int_to_ptr.vmem [resolvable:$true] %s738
          %741 = dma.vmem_to_hbm [thread:$0]  %s739, 128, %s736, %s725
        $region44: #{mlp_forward.1} parent=39 // pred_fallthru
          _
      $region40: #{mlp_forward.1} parent=5 // pred_fallthru
        _
      %p742 = scmp.le.s32.totalorder 2, %s14
      // Predicated region
      $region45: #{mlp_forward.1} parent=5 // pred_check
        %p743 = pneg %p742
      $region46: #{mlp_forward.1} parent=5 // pred_check_branch
        %745 = sbr.rel (%p743) target = $region48
      $region47: #{mlp_forward.1} parent=5 // pred_region
        %s746 = ssub.s32 %s14, 2
        // Predicated region
        $region49: #{mlp_forward.1} parent=47 // pred_check
          %p747 = pneg %p153
        $region50: #{mlp_forward.1} parent=47 // pred_check_branch
          %749 = sbr.rel (%p747) target = $region52
        $region51: #{mlp_forward.1} parent=47 // pred_region
          %s750 = sand.u32 %s138, 1
          %s751 = scalar_lea.sflag [#allocation3], %s750
          %s752 = sand.u32 %s138, 1
          %s753 = smul.addr %s752, 8
          %s754 = scalar_lea.vmem [#allocation2], %s753
          %755 = dma.done %s751, 128
        $region52: #{mlp_forward.1} parent=47 // pred_fallthru
          _
      $region48: #{mlp_forward.1} parent=5 // pred_fallthru
        _
    $region6: #{mlp_forward.1} parent=1 // loop_footer
      %s18 = sadd.s32 1, %s14
    $region7: #{mlp_forward.1} parent=1 // loop_footer_branch
      %13 = sbr.rel target = $region3
    $region8: #{mlp_forward.1} parent=1 // loop_exit
      _
    %756 = vsyncpa [#allocation3], 1
    %s757 = scalar_lea.sflag [#allocation3], 1
    %758 = vsyncpa %s757, 1

</llo_original>
